<compile_context>
chip_gen: v7x
topology: tpu7x:2x2x1
jax: 0.10.0
libtpu: 0.0.40
codegen_flags: <defaults>
</compile_context>

<pallas_src>
import functools
import math

import numpy as np

import jax
import jax.numpy as jnp
from jax import lax
from jax.experimental import pallas as pl
from jax.experimental.pallas import tpu as pltpu


# --------------------------------------------------------------------------- #
# DADA CIFAR10 policy table (copied verbatim from the PyTorch module).
# --------------------------------------------------------------------------- #
CIFAR10_POLICIES = [
    [('TranslateX', 0.5183464288711548, 0.5752825736999512), ('Rotate', 0.5693835616111755, 0.5274667739868164)],
    [('ShearX', 0.5028448104858398, 0.4595153331756592), ('Sharpness', 0.5036740303039551, 0.5378073453903198)],
    [('Brightness', 0.5574088096618652, 0.5563607811927795), ('Sharpness', 0.5241265296936035, 0.4670485556125641)],
    [('ShearY', 0.6167989373207092, 0.4837495684623718), ('Brightness', 0.4740375578403473, 0.4566589295864105)],
    [('ShearX', 0.4406820833683014, 0.5844581723213196), ('TranslateY', 0.3973384499549866, 0.5110136270523071)],
    [('Rotate', 0.39651215076446533, 0.517960250377655), ('Equalize', 0.3761792480945587, 0.36424142122268677)],
    [('AutoContrast', 0.4399465024471283, 0.48347008228302), ('Cutout', 0.49450358748435974, 0.5)],
    [('AutoContrast', 0.5601025819778442, 0.479571133852005), ('Color', 0.44876909255981445, 0.6113184690475464)],
    [('Rotate', 0.4231756627559662, 0.6356207132339478), ('AutoContrast', 0.59876549243927, 0.5785224437713623)],
    [('Invert', 0.39854735136032104, 0.5), ('Color', 0.4968028664588928, 0.4379926025867462)],
    [('Posterize', 0.5603401064872742, 0.49880319833755493), ('Brightness', 0.5293631553649902, 0.47918644547462463)],
    [('TranslateY', 0.4231869578361511, 0.5149744749069214), ('AutoContrast', 0.3750160336494446, 0.5654526352882385)],
    [('ShearX', 0.3773101270198822, 0.5), ('Contrast', 0.485131174325943, 0.5186365842819214)],
    [('ShearY', 0.5420096516609192, 0.6018360257148743), ('Rotate', 0.30701273679733276, 0.5576906800270081)],
    [('Posterize', 0.4173527657985687, 0.4971156716346741), ('Color', 0.450246661901474, 0.5576846599578857)],
    [('TranslateX', 0.4143139123916626, 0.450955331325531), ('TranslateY', 0.3599278926849365, 0.4812163710594177)],
    [('TranslateX', 0.574902355670929, 0.5), ('Brightness', 0.5378687381744385, 0.4751467704772949)],
    [('TranslateX', 0.5295567512512207, 0.5137100219726562), ('Cutout', 0.6851200461387634, 0.4909016489982605)],
    [('ShearX', 0.4579184353351593, 0.44350510835647583), ('Invert', 0.41791805624961853, 0.3984798192977905)],
    [('Rotate', 0.49958375096321106, 0.4244190752506256), ('Contrast', 0.49455592036247253, 0.4244190752506256)],
    [('Rotate', 0.42886781692504883, 0.46792319416999817), ('Solarize', 0.49862080812454224, 0.41575634479522705)],
    [('TranslateY', 0.7362872958183289, 0.5113809704780579), ('Color', 0.3918609917163849, 0.5744326114654541)],
    [('Equalize', 0.42245715856552124, 0.5293998718261719), ('Sharpness', 0.39708659052848816, 0.43052399158477783)],
    [('Solarize', 0.7260022759437561, 0.42120808362960815), ('Cutout', 0.5075806379318237, 0.46120622754096985)],
    [('ShearX', 0.5757555961608887, 0.563892662525177), ('TranslateX', 0.4761257469654083, 0.49035176634788513)],
]

_NO_MAG_OPS = ('AutoContrast', 'Equalize', 'Invert')
_GEOMETRIC_OPS = frozenset(('ShearX', 'ShearY', 'TranslateX', 'TranslateY', 'Rotate'))
_TRANSLATE_OPS = ('TranslateX', 'TranslateY')
# Ops that only need per-pixel (across-channel) information and can therefore
# run on an output-column slab after a geometric warp.
_LOCAL_OPS = frozenset(('Brightness', 'Color', 'Invert', 'Solarize', 'Posterize',
                        'Cutout', 'Identity'))

_OP_SLOTS = 8                      # scalar parameter slots per op in SMEM


def _augmentation_space(num_bins):
    return {
        'ShearX': np.linspace(-0.3, 0.3, num_bins),
        'ShearY': np.linspace(-0.3, 0.3, num_bins),
        'TranslateX': np.linspace(-0.45, 0.45, num_bins),
        'TranslateY': np.linspace(-0.45, 0.45, num_bins),
        'Rotate': np.linspace(-30.0, 30.0, num_bins),
        'Brightness': np.linspace(0.1, 1.9, num_bins),
        'Color': np.linspace(0.1, 1.9, num_bins),
        'Contrast': np.linspace(0.1, 1.9, num_bins),
        'Sharpness': np.linspace(0.1, 1.9, num_bins),
        'Posterize': np.round(np.linspace(4, 8, num_bins)).astype(np.int32),
        'Solarize': np.round(np.linspace(0, 256, num_bins)).astype(np.int32),
        'AutoContrast': None,
        'Equalize': None,
        'Invert': None,
        'Cutout': np.linspace(0.0, 0.2, num_bins),
    }


@functools.lru_cache(maxsize=None)
def _vmem_limit_bytes():
    """Generation-aware scoped-VMEM limit: ~96 MiB on 128 MiB parts (v5e/v6e),
    ~48 MiB on 64 MiB parts (v7x)."""
    cap = 0
    try:
        info = pltpu.get_tpu_info()
        for attr in ('vmem_capacity_bytes', 'vmem_bytes', 'vmem_size_bytes'):
            v = getattr(info, attr, None)
            if isinstance(v, (int, np.integer)) and int(v) > 0:
                cap = int(v)
                break
    except Exception:
        cap = 0
    if cap <= 0:
        cap = 64 * 1024 * 1024          # conservative fallback (v7x physical VMEM)
    return int(min(cap * 3 // 4, 100 * 1024 * 1024))


# --------------------------------------------------------------------------- #
# Pallas kernel: one fused, trace-time-specialized augmentation chain
# --------------------------------------------------------------------------- #
def _finalize(x):
    # emulate uint8 storage between PIL ops: clip to [0, 255], round half-up
    return jnp.floor(jnp.clip(x, 0.0, 255.0) + 0.5)


def _aug_kernel(params_ref, img_ref, out_ref, *, ops, C, BC, H, W, tile_n):
    """Fused augmentation chain.

    params_ref : (len(ops)*_OP_SLOTS,) float32 in SMEM, 8 scalar slots per op.
    img_ref    : (BC, H*W)     float32 in VMEM -- full image(s), lane dense.
    out_ref    : (BC, tile_n)  float32 in VMEM -- output-column slab of this
                 grid step (tile_n == H*W when the call is untiled).
    ops        : trace-time tuple of (name, static_params); fully specialized.
    """
    N = H * W
    untiled = (tile_n == N)
    col0 = 0 if untiled else pl.program_id(0) * tile_n   # absolute output column offset

    def par(oi, k):
        return params_ref[oi * _OP_SLOTS + k]

    def abs_cols(width, off):
        # absolute flat pixel indices of the current view, as a (1, width) row
        return off + lax.broadcasted_iota(jnp.int32, (1, width), 1)

    def luminance(v):
        # PIL 'L' conversion floor((299R+587G+114B)/1000), replicated across the
        # C channel rows of every image via a block-diagonal mixing matmul on the
        # MXU.  Weights split into two bf16-exact parts (299=256+43, 587=512+75,
        # 114=114+0) so the bf16 MXU passes stay integer-exact.
        r = lax.broadcasted_iota(jnp.int32, (BC, BC), 0)
        c = lax.broadcasted_iota(jnp.int32, (BC, BC), 1)
        same = (r // C) == (c // C)
        ch = c % C
        w_hi = jnp.where(ch == 0, 256.0, jnp.where(ch == 1, 512.0, 114.0))
        w_lo = jnp.where(ch == 0, 43.0, jnp.where(ch == 1, 75.0, 0.0))
        m_hi = jnp.where(same, w_hi, 0.0).astype(jnp.bfloat16)
        m_lo = jnp.where(same, w_lo, 0.0).astype(jnp.bfloat16)
        vb = v.astype(jnp.bfloat16)          # integers 0..255 are exact in bf16
        s = (jnp.dot(m_hi, vb, preferred_element_type=jnp.float32)
             + jnp.dot(m_lo, vb, preferred_element_type=jnp.float32))
        return jnp.floor(s / 1000.0)

    x = img_ref[...]                         # (BC, N) float32, full view
    cur_n = N                                # width of the current view of x
    view_col0 = 0                            # absolute column offset of that view

    for oi, (name, static) in enumerate(ops):
        if name in _TRANSLATE_OPS and untiled:
            # Uniform integer shift: one static lane-roll + validity mask (O(N)
            # work, no MXU, no selection matrix).  Shift is baked at trace time.
            assert cur_n == N, "translate must see the full source image"
            (d,) = static                                          # integer pixel shift
            flat_shift = d if name == 'TranslateX' else d * W
            shift = (-flat_shift) % N
            rolled = x if shift == 0 else pltpu.roll(x, shift, 1)
            i_abs = abs_cols(N, 0)
            coord = (i_abs % W) if name == 'TranslateX' else (i_abs // W)
            hi = W if name == 'TranslateX' else H
            valid = (coord + d >= 0) & (coord + d < hi)
            x = jnp.where(valid, rolled, 0.0)
            # values are still exact integers in [0, 255]; no _finalize needed

        elif name in _GEOMETRIC_OPS:
            # Nearest-neighbour inverse-affine gather via a one-hot selection
            # matmul (Rotate / ShearX / ShearY, or Translate on the tiled path).
            # Index math is O(N) row-vector work; the compare broadcasts a
            # (N, 1) iota against the (1, tile_n) source row -- no (N, tile_n)
            # int32 intermediate.  bf16 operands, f32 accumulation (exact).
            assert cur_n == N, "geometric op must see the full source image"
            a, b, c = par(oi, 0), par(oi, 1), par(oi, 2)
            d, e, f = par(oi, 3), par(oi, 4), par(oi, 5)
            i_abs = abs_cols(tile_n, col0)                        # (1, tile_n)
            xo = (i_abs % W).astype(jnp.float32) + 0.5            # PIL samples pixel centers
            yo = (i_abs // W).astype(jnp.float32) + 0.5
            sx = jnp.floor(a * xo + b * yo + c).astype(jnp.int32)
            sy = jnp.floor(d * xo + e * yo + f).astype(jnp.int32)
            valid = (sx >= 0) & (sx < W) & (sy >= 0) & (sy < H)
            src = jnp.where(valid, sy * W + sx, -1)               # (1, tile_n); -1 -> fill 0
            j = lax.broadcasted_iota(jnp.int32, (N, 1), 0)        # (N, 1), broadcast compare
            selT = (j == src).astype(jnp.bfloat16)                # one-hot, bf16 (exact)
            x = jnp.dot(x.astype(jnp.bfloat16), selT,
                        preferred_element_type=jnp.float32)       # (BC, tile_n), exact ints
            cur_n = tile_n
            view_col0 = col0

        elif name == 'Invert':
            x = _finalize(255.0 - x)

        elif name == 'Solarize':
            thr = par(oi, 0)
            x = _finalize(jnp.where(x >= thr, 255.0 - x, x))

        elif name == 'Posterize':
            step = par(oi, 0)                         # 2 ** (8 - bits)
            x = _finalize(jnp.floor(x / step) * step)

        elif name == 'Brightness':
            x = _finalize(x * par(oi, 0))

        elif name == 'Color':
            fac = par(oi, 0)
            L = luminance(x)
            x = _finalize(L + fac * (x - L))

        elif name == 'Contrast':
            fac = par(oi, 0)
            L = luminance(x)
            # rows within an image block are identical, so the per-row mean of L
            # equals the per-image grayscale mean
            mean = jnp.floor(jnp.mean(L, axis=1, keepdims=True) + 0.5)
            x = _finalize(mean + fac * (x - mean))

        elif name == 'Sharpness':
            fac = par(oi, 0)
            # Separable 3x3 SMOOTH kernel [[1,1,1],[1,5,1],[1,1,1]]/13 on the flat
            # lane layout: 4 XLU rolls instead of 8.  The 1-pixel border keeps the
            # original pixels (PIL semantics), which also hides flat-roll wraparound.
            h = x + pltpu.roll(x, 1, 1) + pltpu.roll(x, cur_n - 1, 1)
            box = h + pltpu.roll(h, W, 1) + pltpu.roll(h, cur_n - W, 1)
            deg = jnp.floor((box + 4.0 * x) / 13.0 + 0.5)
            i_abs = abs_cols(cur_n, view_col0)
            xc = i_abs % W
            yc = i_abs // W
            interior = (xc >= 1) & (xc <= W - 2) & (yc >= 1) & (yc <= H - 2)
            deg = jnp.where(interior, deg, x)
            x = _finalize(deg + fac * (x - deg))

        elif name == 'AutoContrast':
            lo = jnp.min(x, axis=1, keepdims=True)                # per-channel (row) min
            hi_ = jnp.max(x, axis=1, keepdims=True)
            scale = 255.0 / jnp.maximum(hi_ - lo, 1.0)
            x = _finalize(jnp.where(hi_ > lo, (x - lo) * scale, x))

        elif name == 'Cutout':
            x0, y0, x1, y1 = par(oi, 0), par(oi, 1), par(oi, 2), par(oi, 3)
            i_abs = abs_cols(cur_n, view_col0)
            xc = (i_abs % W).astype(jnp.float32)
            yc = (i_abs // W).astype(jnp.float32)
            # PIL ImageDraw.rectangle includes both endpoints -> inclusive mask.
            mask = (xc >= x0) & (xc <= x1) & (yc >= y0) & (yc <= y1)
            r = lax.broadcasted_iota(jnp.int32, (BC, 1), 0) % C
            color = jnp.where(r == 0, 125.0, jnp.where(r == 1, 123.0, 114.0))
            x = _finalize(jnp.where(mask, color, x))

        elif name == 'Equalize':
            # TODO(synk): PIL per-channel 256-bin histogram equalization needs a
            # histogram + cumulative-sum LUT (scatter/cumsum) with no clean Mosaic
            # lowering; left as a pass-through.
            pass

        else:  # 'Identity'
            pass

    out_ref[...] = x                          # one full-ref, lane-dense store


# --------------------------------------------------------------------------- #
# Host-side wrappers
# --------------------------------------------------------------------------- #
def _chain_is_tileable(op_names):
    """True if the chain can run per output-column slab: exactly one geometric
    op, and every op after it is purely per-pixel local."""
    seen_geo = False
    for name in op_names:
        if name in _GEOMETRIC_OPS:
            if seen_geo:
                return False
            seen_geo = True
        elif seen_geo and name not in _LOCAL_OPS:
            return False
    return seen_geo


def _choose_tile_n(op_names, N, vmem_limit):
    """Single grid step unless the one-hot selection working set threatens VMEM.
    Translate-only chains use the roll path and never need tiling."""
    needs_onehot = any(n in _GEOMETRIC_OPS and n not in _TRANSLATE_OPS
                       for n in op_names)
    if not needs_onehot:
        return N
    budget = vmem_limit // 2
    if N * N * 8 <= budget or not _chain_is_tileable(op_names):
        return N
    for cand in (8192, 4096, 2048, 1024, 512, 256, 128):
        if N % cand == 0 and N * cand * 8 <= budget:
            return cand
    return N                                   # pathological sizes: run untiled


@functools.lru_cache(maxsize=None)
def _build_aug_call(op_specs, C, BC, H, W, tile_n, vmem_limit):
    N = H * W
    grid_n = N // tile_n
    kernel = functools.partial(_aug_kernel, ops=op_specs, C=C, BC=BC, H=H, W=W,
                               tile_n=tile_n)
    if grid_n > 1:
        # Constant full-image block re-used every grid step: single-buffer it to
        # halve its resident VMEM footprint (matters on v7x's 64 MiB).
        img_spec = pl.BlockSpec((BC, N), lambda j: (0, 0),
                                pipeline_mode=pl.Buffered(1))
    else:
        img_spec = pl.BlockSpec((BC, N), lambda j: (0, 0))
    call = pl.pallas_call(
        kernel,
        out_shape=jax.ShapeDtypeStruct((BC, N), jnp.float32),
        grid=(grid_n,),
        in_specs=[
            pl.BlockSpec(memory_space=pltpu.MemorySpace.SMEM),    # op scalar params
            img_spec,                                             # full image(s), VMEM
        ],
        out_specs=pl.BlockSpec((BC, tile_n), lambda j: (0, j)),   # lane-dense output slab
        compiler_params=pltpu.CompilerParams(
            dimension_semantics=("parallel",),
            vmem_limit_bytes=vmem_limit),
    )
    return jax.jit(call)


def _run_aug_kernel(img, op_specs, params_flat):
    """Apply the fused op chain to a (B, C, H, W) float32 batch in [0, 255]."""
    B, C, H, W = img.shape
    N = H * W
    BC = B * C
    BC_pad = -(-BC // 8) * 8                  # pad sublanes (and MXU rows) to 8
    op_names = tuple(name for name, _ in op_specs)
    vmem_limit = _vmem_limit_bytes()
    tile_n = _choose_tile_n(op_names, N, vmem_limit)
    call = _build_aug_call(tuple(op_specs), C, BC_pad, H, W, tile_n, vmem_limit)
    flat = img.reshape(BC, N).astype(jnp.float32)      # host-side glue (plain JAX)
    if BC_pad != BC:
        flat = jnp.concatenate(
            [flat, jnp.zeros((BC_pad - BC, N), jnp.float32)], axis=0)
    out = call(params_flat, flat)
    return out[:BC].reshape(B, C, H, W)


def _op_params(op_name, magnitude, H, W, rng=None):
    """Pack per-op runtime scalars (8 SMEM slots) plus trace-time-static ints."""
    p = np.zeros((_OP_SLOTS,), np.float32)
    static = ()
    if op_name in _GEOMETRIC_OPS:
        if op_name == 'ShearX':
            co = (1.0, magnitude, 0.0, 0.0, 1.0, 0.0)
        elif op_name == 'ShearY':
            co = (1.0, 0.0, 0.0, magnitude, 1.0, 0.0)
        elif op_name == 'TranslateX':
            co = (1.0, 0.0, magnitude * W, 0.0, 1.0, 0.0)
            static = (int(math.floor(magnitude * W + 0.5)),)   # static lane-roll shift
        elif op_name == 'TranslateY':
            co = (1.0, 0.0, 0.0, 0.0, 1.0, magnitude * H)
            static = (int(math.floor(magnitude * H + 0.5)),)
        else:  # Rotate: PIL rotates counter-clockwise; coeffs map output->input.
            theta = -math.radians(magnitude)
            a, b = math.cos(theta), math.sin(theta)
            d, e = -math.sin(theta), math.cos(theta)
            cx, cy = W / 2.0, H / 2.0
            c = cx - (a * cx + b * cy)
            f = cy - (d * cx + e * cy)
            co = (a, b, c, d, e, f)
        p[:6] = co
    elif op_name == 'Posterize':
        p[0] = float(2 ** (8 - int(magnitude)))
    elif op_name in ('Solarize', 'Brightness', 'Color', 'Contrast', 'Sharpness'):
        p[0] = float(magnitude)
    elif op_name == 'Cutout':
        rng = rng if rng is not None else np.random
        v = magnitude * W                              # Cutout(): v = v * img.size[0]
        x0 = int(max(0.0, rng.uniform(0.0, W) - v / 2.0))   # host RNG: no device sync
        y0 = int(max(0.0, rng.uniform(0.0, H) - v / 2.0))
        p[0:4] = (x0, y0, min(float(W), x0 + v), min(float(H), y0 + v))
    return p, static


class DADAPallas:
    """JAX/Pallas re-implementation of DADA.forward (CIFAR10 policy).

    Accepts a single (C, H, W) image or a (B, C, H, W) batch (the batch shares
    one policy draw, i.e. one forward call).  Values are float32 in the uint8
    range [0, 255]; output has the same shape and dtype.  Geometric warps fill
    out-of-bounds pixels with 0 (matching the PyTorch module's fill=None).
    """

    def __init__(self, seed=0):
        self.policies = CIFAR10_POLICIES
        self.rng = np.random.RandomState(seed)   # host RNG -> no device<->host syncs

    def __call__(self, img):
        squeeze = (img.ndim == 3)
        if squeeze:
            img = img[None]
        B, C, H, W = img.shape
        assert C == 3, "DADA CIFAR10 policies assume RGB images"
        # get_params(): policy id, probs, signs (signs unused, kept for parity)
        policy_id = int(self.rng.randint(len(self.policies)))
        probs = self.rng.rand(2)
        _ = self.rng.randint(0, 2, size=2)
        op_meta = _augmentation_space(10)
        op_specs, params = [], []
        for i, (op_name, p, mag_frac) in enumerate(self.policies[policy_id]):
            if probs[i] <= p:
                mag_id = round(mag_frac * 9)
                magnitude = (float(op_meta[op_name][mag_id])
                             if op_name not in _NO_MAG_OPS else 0.0)
                pv, st = _op_params(op_name, magnitude, H, W, self.rng)
                op_specs.append((op_name, st))
                params.append(pv)
        if not op_specs:                      # neither sub-policy op fired
            return img[0] if squeeze else img
        params_flat = jnp.asarray(np.concatenate(params), dtype=jnp.float32)
        out = _run_aug_kernel(img, tuple(op_specs), params_flat)
        return out[0] if squeeze else out


def _forced_chain(img, chain, seed=0):
    """Run an explicit (op_name, magnitude) chain -- used to exercise kernel paths."""
    H, W = int(img.shape[-2]), int(img.shape[-1])
    rng = np.random.RandomState(seed)
    op_specs, params = [], []
    for name, mag in chain:
        pv, st = _op_params(name, mag, H, W, rng)
        op_specs.append((name, st))
        params.append(pv)
    params_flat = jnp.asarray(np.concatenate(params), dtype=jnp.float32)
    return _run_aug_kernel(img, tuple(op_specs), params_flat)


# --------------------------------------------------------------------------- #
if __name__ == "__main__":
    key = jax.random.PRNGKey(0)
    k_img, k_big = jax.random.split(key)

    # batch of 2 synthetic "uint8" RGB images, layout (B, C, H, W) float32 in [0, 255]
    img = jnp.floor(jax.random.uniform(k_img, (2, 3, 16, 16), minval=0.0, maxval=256.0))
    img = jnp.clip(img, 0.0, 255.0).astype(jnp.float32)

    # 1) policy-driven forward (0, 1 or 2 ops may fire for this host-RNG seed)
    dada = DADAPallas(seed=0)
    out = jax.block_until_ready(dada(img))
    assert out.shape == img.shape and out.dtype == jnp.float32

    # 2) force the main kernel paths explicitly (deterministic coverage)
    # roll-based TranslateX with an exact-value check against a jnp reference
    t = jax.block_until_ready(_forced_chain(img, [('TranslateX', 0.2)]))
    dx = int(math.floor(0.2 * 16 + 0.5))
    xs = jnp.arange(16)
    expect = jnp.where((xs + dx < 16)[None, None, None, :],
                       jnp.roll(img, -dx, axis=-1), 0.0)
    np.testing.assert_array_equal(np.asarray(t), np.asarray(expect))

    # one-hot Rotate on the MXU + per-image Contrast (block-diagonal luminance matmul)
    r = jax.block_until_ready(_forced_chain(img, [('Rotate', 15.0), ('Contrast', 1.3)]))
    assert r.shape == img.shape

    # separable (4-roll) Sharpness + row-wise AutoContrast
    s = jax.block_until_ready(
        _forced_chain(img, [('Sharpness', 1.5), ('AutoContrast', 0.0)]))
    assert s.shape == img.shape

    # 32x32: roll-based TranslateY + Color, single grid step (no tiling at CIFAR sizes)
    big = jnp.floor(jax.random.uniform(k_big, (2, 3, 32, 32), minval=0.0, maxval=256.0))
    big = jnp.clip(big, 0.0, 255.0).astype(jnp.float32)
    b = jax.block_until_ready(_forced_chain(big, [('TranslateY', -0.3), ('Color', 0.6)]))
    assert b.shape == big.shape

    # ShearX (one-hot) + Cutout (SMEM-parameterised local op)
    c = jax.block_until_ready(_forced_chain(big, [('ShearX', 0.25), ('Cutout', 0.15)]))
    assert c.shape == big.shape

    for o in (out, t, r, s, b, c):
        a = np.asarray(o)
        assert np.all(a >= 0.0) and np.all(a <= 255.0)

    print("KERNEL_OK")
</pallas_src>

<mosaic_0001>
module attributes {stable_mosaic.version = 11 : i64} {
  func.func @_aug_kernel(%arg0: i32, %arg1: memref<8xf32, #tpu.memory_space<smem>>, %arg2: memref<8x256xf32, #tpu.memory_space<vmem>>, %arg3: memref<8x256xf32, #tpu.memory_space<vmem>>) attributes {dimension_semantics = [#tpu.dimension_semantics<parallel>], iteration_bounds = array<i64: 1>, scalar_prefetch = 0 : i64, scratch_operands = 0 : i64, tpu.core_type = #tpu.core_type<tc>, window_params = [{transform_indices = @transform_0, window_bounds = array<i64: 8>}, {pipeline_mode = #tpu.pipeline_mode<synchronous>, transform_indices = @transform_1, window_bounds = array<i64: 8, 256>}, {transform_indices = @transform_2, window_bounds = array<i64: 8, 256>}]} {
    %c0 = arith.constant 0 : index
    %c0_0 = arith.constant 0 : index
    %0 = vector.load %arg2[%c0, %c0_0] : memref<8x256xf32, #tpu.memory_space<vmem>>, vector<8x256xf32>
    %c253_i32 = arith.constant 253 : i32
    %1 = tpu.dynamic_rotate %0 by %c253_i32 dim 1 : vector<8x256xf32>, i32 -> vector<8x256xf32>
    %2 = tpu.iota {dimensions = array<i32: 1>} : vector<1x256xi32>
    %c0_i32 = arith.constant 0 : i32
    %3 = vector.broadcast %c0_i32 : i32 to vector<1x256xi32>
    %4 = arith.addi %3, %2 : vector<1x256xi32>
    %c16_i32 = arith.constant 16 : i32
    %c0_i32_1 = arith.constant 0 : i32
    %5 = arith.cmpi eq, %c16_i32, %c0_i32_1 : i32
    %c1_i32 = arith.constant 1 : i32
    %6 = arith.select %5, %c1_i32, %c16_i32 : i32
    %7 = vector.broadcast %6 : i32 to vector<1x256xi32>
    %8 = arith.remsi %4, %7 : vector<1x256xi32>
    %c0_i32_2 = arith.constant 0 : i32
    %9 = vector.broadcast %c0_i32_2 : i32 to vector<1x256xi32>
    %10 = arith.cmpi ne, %8, %9 : vector<1x256xi32>
    %c0_i32_3 = arith.constant 0 : i32
    %11 = vector.broadcast %c0_i32_3 : i32 to vector<1x256xi32>
    %12 = arith.cmpi slt, %8, %11 : vector<1x256xi32>
    %c0_i32_4 = arith.constant 0 : i32
    %13 = arith.cmpi slt, %6, %c0_i32_4 : i32
    %14 = vector.broadcast %13 : i1 to vector<1x256xi1>
    %15 = vector.broadcast %14 : vector<1x256xi1> to vector<1x256xi1>
    %16 = arith.xori %12, %15 : vector<1x256xi1>
    %17 = arith.andi %16, %10 : vector<1x256xi1>
    %18 = vector.broadcast %6 : i32 to vector<1x256xi32>
    %19 = arith.addi %8, %18 : vector<1x256xi32>
    %20 = arith.select %17, %19, %8 : vector<1x256xi1>, vector<1x256xi32>
    %c3_i32 = arith.constant 3 : i32
    %21 = vector.broadcast %c3_i32 : i32 to vector<1x256xi32>
    %22 = arith.addi %20, %21 : vector<1x256xi32>
    %c0_i32_5 = arith.constant 0 : i32
    %23 = vector.broadcast %c0_i32_5 : i32 to vector<1x256xi32>
    %24 = arith.cmpi sge, %22, %23 : vector<1x256xi32>
    %c3_i32_6 = arith.constant 3 : i32
    %25 = vector.broadcast %c3_i32_6 : i32 to vector<1x256xi32>
    %26 = arith.addi %20, %25 : vector<1x256xi32>
    %c16_i32_7 = arith.constant 16 : i32
    %27 = vector.broadcast %c16_i32_7 : i32 to vector<1x256xi32>
    %28 = arith.cmpi slt, %26, %27 : vector<1x256xi32>
    %29 = arith.andi %24, %28 : vector<1x256xi1>
    %cst = arith.constant 0.000000e+00 : f32
    %30 = vector.shape_cast %29 : vector<1x256xi1> to vector<1x256xi1>
    %31 = vector.broadcast %30 : vector<1x256xi1> to vector<8x256xi1>
    %32 = vector.broadcast %cst : f32 to vector<8x256xf32>
    %33 = arith.select %31, %1, %32 : vector<8x256xi1>, vector<8x256xf32>
    %c0_8 = arith.constant 0 : index
    %c0_9 = arith.constant 0 : index
    %34 = vector.load %arg3[%c0_8, %c0_9] : memref<8x256xf32, #tpu.memory_space<vmem>>, vector<8x256xf32>
    tpu.vector_store %arg3[%c0_8, %c0_9], %33 {strides = array<i32>} : memref<8x256xf32, #tpu.memory_space<vmem>>, vector<8x256xf32>,
    return
  }
  func.func @transform_0(%arg0: i32) -> i32 {
    %c0_i32 = arith.constant 0 : i32
    %c0_i32_0 = arith.constant 0 : i32
    return %c0_i32 : i32
  }
  func.func @transform_1(%arg0: i32) -> (i32, i32) {
    %c0_i32 = arith.constant 0 : i32
    %c0_i32_0 = arith.constant 0 : i32
    %c0_i32_1 = arith.constant 0 : i32
    return %c0_i32, %c0_i32_0 : i32, i32
  }
  func.func @transform_2(%arg0: i32) -> (i32, i32) {
    %c0_i32 = arith.constant 0 : i32
    %c0_i32_0 = arith.constant 0 : i32
    return %c0_i32, %arg0 : i32, i32
  }
}

</mosaic_0001>

<llo_original>
// kernel: tpu_custom_call.1
$region0: #{tpu_custom_call.1}
  #allocation0 [shape = 'u32[]', space=smem, size = 0x4, offset = 0x4, fixed_abs, tag = 'smem constant byte address 0x4 - core index']
  #allocation1 [shape = 'u32[144,128]{1,0:T(1,128)}', space=vmem, size = 0x12000, scoped, tag = 'internal scratch']
  %s0 = inlined_call_operand.hbm [shape: f32[8], index: 0, kind: input, shape index: {}]
  %s1 = inlined_call_operand.hbm [shape: f32[8,256], index: 1, kind: input, shape index: {}]
  %s2 = inlined_call_operand.hbm [shape: f32[8,256], index: 2, kind: output, shape index: {}]
  %s3 = sld [smem:[#allocation0]]
  $region26: #{tpu_custom_call.1} parent=0
    _
  %s5 = ssub.s32 1, %s3
  %s6 = scalar_select 0, %s5, %s3
  $region1: #{tpu_custom_call.1} parent=0
    #allocation2 [shape = 'u8[512]{0}', space=smem, size = 0x200, scoped, tag = 'input window, operand 0, single buffered']
    #allocation3 [shape = 's32[1]{0}', space=sflag, size = 0x4, scoped, tag = 'scoped memory for tpu_custom_call.1']
    #allocation4 [shape = 's32[1]{0}', space=sflag, size = 0x4, scoped, tag = 'scoped memory for tpu_custom_call.1']
    #allocation5 [shape = 's32[1]{0}', space=sflag, size = 0x4, scoped, tag = 'scoped memory for tpu_custom_call.1']
    #allocation6 [shape = 'u8[8192]{0}', space=vmem, size = 0x2000, scoped, tag = 'input window, operand 1, single buffered']
    #allocation7 [shape = 'u8[8192]{0}', space=vmem, size = 0x2000, scoped, tag = 'output window, operand 0, single buffered']
    %7 = vsyncpa [#allocation5], 0
    %8 = vsyncpa [#allocation3], 0
    %9 = vsyncpa [#allocation4], 0
    // Predicated region
    $region2: #{tpu_custom_call.1} parent=1 // pred_check
      _
    $region3: #{tpu_custom_call.1} parent=1 // pred_check_branch
      %11 = sbr.rel (0) target = $region5
    $region4: #{tpu_custom_call.1} parent=1 // pred_region
      %s13 = ssub.s32 16, 16
      %14 = vsyncadd [#allocation5], %s13
      %17 = dma.hbm_to_smem %s0, 16, [#allocation2], [#allocation5]
    $region5: #{tpu_custom_call.1} parent=1 // pred_fallthru
      _
    // Predicated region
    $region6: #{tpu_custom_call.1} parent=1 // pred_check
      _
    $region7: #{tpu_custom_call.1} parent=1 // pred_check_branch
      %19 = sbr.rel (0) target = $region9
    $region8: #{tpu_custom_call.1} parent=1 // pred_region
      %s21 = ssub.s32 256, 256
      %22 = vsyncadd [#allocation3], %s21
      %s24 = sshll.u32 [#allocation6], 4
      %s25 = int_to_ptr.vmem [resolvable:$true] %s24
      %27 = dma.hbm_to_vmem [thread:$0]  %s1, 256, %s25, [#allocation3]
    $region9: #{tpu_custom_call.1} parent=1 // pred_fallthru
      _
    // Predicated region
    $region10: #{tpu_custom_call.1} parent=1 // pred_check
      _
    $region11: #{tpu_custom_call.1} parent=1 // pred_check_branch
      %29 = sbr.rel (0) target = $region13
    $region12: #{tpu_custom_call.1} parent=1 // pred_region
      %30 = dma.done [#allocation5], 16
    $region13: #{tpu_custom_call.1} parent=1 // pred_fallthru
      _
    // Predicated region
    $region14: #{tpu_custom_call.1} parent=1 // pred_check
      _
    $region15: #{tpu_custom_call.1} parent=1 // pred_check_branch
      %32 = sbr.rel (0) target = $region17
    $region16: #{tpu_custom_call.1} parent=1 // pred_region
      %33 = dma.done [#allocation3], 256
    $region17: #{tpu_custom_call.1} parent=1 // pred_fallthru
      _
    %34 = sfence
    %v35 = vld [vmem:[#allocation6] sm:$0xff]
    %v36 = vld [vmem:[#allocation6 + $0x8] sm:$0xff]
    %37 = vrot.lane.b32.xlu0 %v35, 125
    %v38 = vpop.permute.xlu0 %37
    %39 = vrot.lane.b32.xlu0 %v36, 125
    %v40 = vpop.permute.xlu0 %39
    %v41 = vlaneseq
    %v42 = vand.u32 %v41, 127
    %vm43 = vcmp.lt.s32.totalorder %v42, 125
    %v44 = vsel %vm43, %v38, %v40
    %v45 = vsel %vm43, %v40, %v38
    %v46 = vadd.s32 %v42, 128
    %vm47 = vcmp.lt.s32.totalorder %v42, 0
    %v48 = vsub.s32 0, %v42
    %v49 = vsel %vm47, %v48, %v42
    %v50 = vshrl.u32 %v49, 4
    %v51 = vand.u32 %v49, 15
    %v52 = vsub.s32 0, %v51
    %v53 = vsel %vm47, %v52, %v51
    %vm54 = vcmp.lt.s32.totalorder %v46, 0
    %v55 = vsub.s32 0, %v46
    %v56 = vsel %vm54, %v55, %v46
    %v57 = vshrl.u32 %v56, 4
    %v58 = vand.u32 %v56, 15
    %v59 = vsub.s32 0, %v58
    %v60 = vsel %vm54, %v59, %v58
    %vm61 = vcmp.ne.s32.totalorder %v53, 0
    %vm62 = vcmp.ne.s32.totalorder %v60, 0
    %vm63 = vcmp.lt.s32.totalorder %v53, 0
    %vm64 = vcmp.lt.s32.totalorder %v60, 0
    %vm65 = vmand %vm63, %vm61
    %vm66 = vmand %vm64, %vm62
    %v67 = vadd.s32 %v53, 16
    %v68 = vadd.s32 %v60, 16
    %v69 = vsel %vm65, %v67, %v53
    %v70 = vsel %vm66, %v68, %v60
    %v71 = vadd.s32 %v69, 3
    %v72 = vadd.s32 %v70, 3
    %vm73 = vcmp.ge.s32.totalorder %v71, 0
    %vm74 = vcmp.ge.s32.totalorder %v72, 0
    %vm75 = vcmp.lt.s32.totalorder %v71, 16
    %vm76 = vcmp.lt.s32.totalorder %v72, 16
    %vm77 = vmand %vm73, %vm75
    %vm78 = vmand %vm74, %vm76
    %v79 = vsel %vm77, 1, 0
    %v80 = vsel %vm78, 1, 0
    %vm81 = vcmp.eq.s32.totalorder %v79, 1
    %vm82 = vcmp.eq.s32.totalorder %v80, 1
    %v83 = vsel %vm81, %v44, 0.0
    %v84 = vsel %vm82, %v45, 0.0
    %85 = vst [vmem:[#allocation7] sm:$0xff] %v83
    %86 = vst [vmem:[#allocation7 + $0x8] sm:$0xff] %v84
    // Predicated region
    $region18: #{tpu_custom_call.1} parent=1 // pred_check
      _
    $region19: #{tpu_custom_call.1} parent=1 // pred_check_branch
      %88 = sbr.rel (0) target = $region21
    $region20: #{tpu_custom_call.1} parent=1 // pred_region
      %s90 = ssub.s32 256, 256
      %91 = vsyncadd [#allocation4], %s90
      %s93 = sshll.u32 [#allocation7], 4
      %s94 = int_to_ptr.vmem [resolvable:$true] %s93
      %96 = dma.vmem_to_hbm [thread:$0]  %s94, 256, %s2, [#allocation4]
    $region21: #{tpu_custom_call.1} parent=1 // pred_fallthru
      _
    // Predicated region
    $region22: #{tpu_custom_call.1} parent=1 // pred_check
      _
    $region23: #{tpu_custom_call.1} parent=1 // pred_check_branch
      %98 = sbr.rel (0) target = $region25
    $region24: #{tpu_custom_call.1} parent=1 // pred_region
      %99 = dma.done [#allocation4], 256
    $region25: #{tpu_custom_call.1} parent=1 // pred_fallthru
      _
    %100 = vsyncpa [#allocation3], 1
    %101 = vsyncpa [#allocation4], 1
    %102 = vsyncpa [#allocation5], 1

</llo_original>
